<compile_context>
chip_gen: v7x
topology: tpu7x:2x2x1
jax: 0.10.0
libtpu: 0.0.40
codegen_flags: <defaults>
</compile_context>

<pallas_src>
import functools

import jax
import jax.numpy as jnp
from jax.experimental import pallas as pl
from jax.experimental.pallas import tpu as pltpu


_MAX_BLOCK_ELEMS = 512 * 1024  # ~2 MiB of f32 per input block per pipeline buffer


def _largest_aligned_divisor(total, unit, cap):
    """Largest multiple of `unit` that divides `total` and is <= cap.
    Falls back to `total` (full extent is always a legal block size)."""
    if total <= cap:
        return total
    d = (cap // unit) * unit
    while d >= unit:
        if total % d == 0:
            return d
        d -= unit
    return total


def _pick_batch_rows(batch, per_row_elems):
    """Batch rows per grid step.  Must divide B and, because it can sit in the
    second-minor block dim, be a multiple of 8 or the full batch extent."""
    cap = max(1, _MAX_BLOCK_ELEMS // max(1, per_row_elems))
    if batch <= cap:
        return batch
    tb = (cap // 8) * 8
    while tb >= 8:
        if batch % tb == 0:
            return tb
        tb -= 8
    return batch  # no aligned divisor fits the budget: take the whole batch dim


def _pick_tiles_lane_dense(batch, flat_len):
    tl = _largest_aligned_divisor(
        flat_len, 128, max(128, _MAX_BLOCK_ELEMS // min(batch, 8)))
    tb = _pick_batch_rows(batch, tl)
    if tb * tl > 2 * _MAX_BLOCK_ELEMS:
        # Forced to take the whole batch dim: shrink the lane tile instead.
        tl = _largest_aligned_divisor(
            flat_len, 128, max(128, _MAX_BLOCK_ELEMS // tb))
    return tb, tl


def _pick_tiles_rows(batch, height, width):
    th = _largest_aligned_divisor(
        height, 8, max(8, _MAX_BLOCK_ELEMS // (min(batch, 8) * width)))
    tb = _pick_batch_rows(batch, th * width)
    return tb, th


def _rowsum(x):
    """Reduce everything but the leading (batch) axis down to shape (tb, 1)."""
    while x.ndim > 2:
        x = jnp.sum(x, axis=-1)
    return jnp.sum(x, axis=-1, keepdims=True)


def _soft_dice_kernel(pred_ref, tgt_ref, out_ref, inter_acc, sums_acc, *, smooth):
    r = pl.program_id(1)

    @pl.when(r == 0)
    def _():
        inter_acc[...] = jnp.zeros_like(inter_acc)
        sums_acc[...] = jnp.zeros_like(sums_acc)

    p = pred_ref[...].astype(jnp.float32)
    t = tgt_ref[...].astype(jnp.float32)

    # Fused reductions: intersection and (p_sum + t_sum) as one reduce each.
    inter_acc[...] += _rowsum(p * t)
    sums_acc[...] += _rowsum(p + t)

    @pl.when(r == pl.num_programs(1) - 1)
    def _():
        dice = (2.0 * inter_acc[...] + smooth) / (sums_acc[...] + smooth)
        out_ref[...] = jnp.float32(1.0) - dice


def soft_dice_loss(pred, target, smooth=1.0):
    """pred: (B, 2, H, W); target: (B, H, W).  Returns scalar soft-dice loss."""
    B, C, H, W = pred.shape
    assert C == 2, "pred must have 2 channels"
    assert target.shape == (B, H, W)
    L = H * W

    if L % 128 == 0:
        # Lane-dense path: flatten spatial dims (free, contiguous reshapes).
        # Channel 1 of batch row b lives at columns [L, 2L) of the flat view,
        # so its block index along the flat axis is offset by n_r = L // TL.
        tb, tl = _pick_tiles_lane_dense(B, L)
        n_r = L // tl
        pred_in = pred.reshape(B, C * L)
        tgt_in = target.reshape(B, L)
        in_specs = [
            pl.BlockSpec((tb, tl), lambda b, r: (b, r + n_r)),
            pl.BlockSpec((tb, tl), lambda b, r: (b, r)),
        ]
    else:
        # General path: keep NCHW, select channel 1 in the index_map, tile H.
        tb, th = _pick_tiles_rows(B, H, W)
        n_r = H // th
        pred_in = pred
        tgt_in = target
        in_specs = [
            pl.BlockSpec((tb, None, th, W), lambda b, r: (b, 1, r, 0)),
            pl.BlockSpec((tb, th, W), lambda b, r: (b, r, 0)),
        ]

    grid = (B // tb, n_r)
    kernel = functools.partial(_soft_dice_kernel, smooth=float(smooth))

    per_batch = pl.pallas_call(
        kernel,
        out_shape=jax.ShapeDtypeStruct((B, 1), jnp.float32),
        grid=grid,
        in_specs=in_specs,
        out_specs=pl.BlockSpec((tb, 1), lambda b, r: (b, 0)),
        scratch_shapes=[
            pltpu.VMEM((tb, 1), jnp.float32),  # running intersection per batch row
            pltpu.VMEM((tb, 1), jnp.float32),  # running sum(p) + sum(t) per row
        ],
        compiler_params=pltpu.CompilerParams(
            # batch blocks are independent -> shard across TensorCores (v7x);
            # the spatial axis carries the running partial sums -> arbitrary.
            dimension_semantics=("parallel", "arbitrary"),
        ),
    )(pred_in, tgt_in)

    return jnp.sum(per_batch) / B


def _reference(pred, target, smooth=1.0):
    B = pred.shape[0]
    p = pred[:, 1].reshape(B, -1)
    t = target.reshape(B, -1)
    inter = jnp.sum(p * t, axis=1)
    dice = (2.0 * inter + smooth) / (jnp.sum(p, axis=1) + jnp.sum(t, axis=1) + smooth)
    return jnp.sum(1.0 - dice) / B


if __name__ == "__main__":
    key = jax.random.PRNGKey(0)
    k1, k2, k3, k4 = jax.random.split(key, 4)

    # Case 1: lane-dense path (H*W is a multiple of 128).
    B, C, H, W = 2, 2, 16, 16
    logits = jax.random.normal(k1, (B, C, H, W), dtype=jnp.float32)
    pred = jax.nn.softmax(logits, axis=1)          # per-pixel softmax over 2 classes
    target = (jax.random.uniform(k2, (B, H, W)) > 0.5).astype(jnp.float32)

    loss = jax.block_until_ready(soft_dice_loss(pred, target, smooth=1.0))
    ref = _reference(pred, target, smooth=1.0)
    assert jnp.allclose(loss, ref, atol=1e-5, rtol=1e-5), (loss, ref)

    # Case 2: fallback NCHW row-tiled path (H*W not a multiple of 128).
    B2, H2, W2 = 2, 12, 12
    logits2 = jax.random.normal(k3, (B2, C, H2, W2), dtype=jnp.float32)
    pred2 = jax.nn.softmax(logits2, axis=1)
    target2 = (jax.random.uniform(k4, (B2, H2, W2)) > 0.5).astype(jnp.float32)

    loss2 = jax.block_until_ready(soft_dice_loss(pred2, target2, smooth=1.0))
    ref2 = _reference(pred2, target2, smooth=1.0)
    assert jnp.allclose(loss2, ref2, atol=1e-5, rtol=1e-5), (loss2, ref2)

    print("KERNEL_OK")
</pallas_src>

<mosaic_0001>
module attributes {stable_mosaic.version = 11 : i64} {
  func.func @_soft_dice_kernel(%arg0: i32, %arg1: i32, %arg2: memref<2x256xf32, #tpu.memory_space<vmem>>, %arg3: memref<2x256xf32, #tpu.memory_space<vmem>>, %arg4: memref<2x1xf32, #tpu.memory_space<vmem>>, %arg5: memref<2x1xf32, #tpu.memory_space<vmem>>, %arg6: memref<2x1xf32, #tpu.memory_space<vmem>>) attributes {dimension_semantics = [#tpu.dimension_semantics<parallel>, #tpu.dimension_semantics<arbitrary>], iteration_bounds = array<i64: 1, 1>, scalar_prefetch = 0 : i64, scratch_operands = 2 : i64, tpu.core_type = #tpu.core_type<tc>, window_params = [{transform_indices = @transform_0, window_bounds = array<i64: 2, 256>}, {transform_indices = @transform_1, window_bounds = array<i64: 2, 256>}, {transform_indices = @transform_2, window_bounds = array<i64: 2, 1>}]} {
    %c0_i32 = arith.constant 0 : i32
    %0 = arith.cmpi eq, %arg1, %c0_i32 : i32
    %1 = arith.extui %0 : i1 to i32
    %c0_i32_0 = arith.constant 0 : i32
    %2 = arith.cmpi ne, %1, %c0_i32_0 : i32
    scf.if %2 {
      %cst_15 = arith.constant 0.000000e+00 : f32
      %20 = vector.broadcast %cst_15 : f32 to vector<2x1xf32>
      %c0_16 = arith.constant 0 : index
      %c0_17 = arith.constant 0 : index
      %21 = vector.load %arg5[%c0_16, %c0_17] : memref<2x1xf32, #tpu.memory_space<vmem>>, vector<2x1xf32>
      tpu.vector_store %arg5[%c0_16, %c0_17], %20 {strides = array<i32>} : memref<2x1xf32, #tpu.memory_space<vmem>>, vector<2x1xf32>,
      %cst_18 = arith.constant 0.000000e+00 : f32
      %22 = vector.broadcast %cst_18 : f32 to vector<2x1xf32>
      %c0_19 = arith.constant 0 : index
      %c0_20 = arith.constant 0 : index
      %23 = vector.load %arg6[%c0_19, %c0_20] : memref<2x1xf32, #tpu.memory_space<vmem>>, vector<2x1xf32>
      tpu.vector_store %arg6[%c0_19, %c0_20], %22 {strides = array<i32>} : memref<2x1xf32, #tpu.memory_space<vmem>>, vector<2x1xf32>,
    } else {
    }
    %c0 = arith.constant 0 : index
    %c0_1 = arith.constant 0 : index
    %3 = vector.load %arg2[%c0, %c0_1] : memref<2x256xf32, #tpu.memory_space<vmem>>, vector<2x256xf32>
    %c0_2 = arith.constant 0 : index
    %c0_3 = arith.constant 0 : index
    %4 = vector.load %arg3[%c0_2, %c0_3] : memref<2x256xf32, #tpu.memory_space<vmem>>, vector<2x256xf32>
    %c0_4 = arith.constant 0 : index
    %c0_5 = arith.constant 0 : index
    %5 = vector.load %arg5[%c0_4, %c0_5] : memref<2x1xf32, #tpu.memory_space<vmem>>, vector<2x1xf32>
    %6 = arith.mulf %3, %4 : vector<2x256xf32>
    %cst = arith.constant dense<0.000000e+00> : vector<2xf32>
    %7 = vector.multi_reduction <add>, %6, %cst [1] : vector<2x256xf32> to vector<2xf32>
    %8 = vector.shape_cast %7 : vector<2xf32> to vector<2x1xf32>
    %9 = arith.addf %5, %8 : vector<2x1xf32>
    %c0_6 = arith.constant 0 : index
    %c0_7 = arith.constant 0 : index
    %10 = vector.load %arg5[%c0_6, %c0_7] : memref<2x1xf32, #tpu.memory_space<vmem>>, vector<2x1xf32>
    tpu.vector_store %arg5[%c0_6, %c0_7], %9 {strides = array<i32>} : memref<2x1xf32, #tpu.memory_space<vmem>>, vector<2x1xf32>,
    %c0_8 = arith.constant 0 : index
    %c0_9 = arith.constant 0 : index
    %11 = vector.load %arg6[%c0_8, %c0_9] : memref<2x1xf32, #tpu.memory_space<vmem>>, vector<2x1xf32>
    %12 = arith.addf %3, %4 : vector<2x256xf32>
    %cst_10 = arith.constant dense<0.000000e+00> : vector<2xf32>
    %13 = vector.multi_reduction <add>, %12, %cst_10 [1] : vector<2x256xf32> to vector<2xf32>
    %14 = vector.shape_cast %13 : vector<2xf32> to vector<2x1xf32>
    %15 = arith.addf %11, %14 : vector<2x1xf32>
    %c0_11 = arith.constant 0 : index
    %c0_12 = arith.constant 0 : index
    %16 = vector.load %arg6[%c0_11, %c0_12] : memref<2x1xf32, #tpu.memory_space<vmem>>, vector<2x1xf32>
    tpu.vector_store %arg6[%c0_11, %c0_12], %15 {strides = array<i32>} : memref<2x1xf32, #tpu.memory_space<vmem>>, vector<2x1xf32>,
    %c0_i32_13 = arith.constant 0 : i32
    %17 = arith.cmpi eq, %arg1, %c0_i32_13 : i32
    %18 = arith.extui %17 : i1 to i32
    %c0_i32_14 = arith.constant 0 : i32
    %19 = arith.cmpi ne, %18, %c0_i32_14 : i32
    scf.if %19 {
      %c0_15 = arith.constant 0 : index
      %c0_16 = arith.constant 0 : index
      %20 = vector.load %arg5[%c0_15, %c0_16] : memref<2x1xf32, #tpu.memory_space<vmem>>, vector<2x1xf32>
      %cst_17 = arith.constant 2.000000e+00 : f32
      %21 = vector.broadcast %cst_17 : f32 to vector<2x1xf32>
      %22 = arith.mulf %21, %20 : vector<2x1xf32>
      %cst_18 = arith.constant 1.000000e+00 : f32
      %23 = vector.broadcast %cst_18 : f32 to vector<2x1xf32>
      %24 = arith.addf %22, %23 : vector<2x1xf32>
      %c0_19 = arith.constant 0 : index
      %c0_20 = arith.constant 0 : index
      %25 = vector.load %arg6[%c0_19, %c0_20] : memref<2x1xf32, #tpu.memory_space<vmem>>, vector<2x1xf32>
      %cst_21 = arith.constant 1.000000e+00 : f32
      %26 = vector.broadcast %cst_21 : f32 to vector<2x1xf32>
      %27 = arith.addf %25, %26 : vector<2x1xf32>
      %28 = arith.divf %24, %27 : vector<2x1xf32>
      %cst_22 = arith.constant 1.000000e+00 : f32
      %29 = vector.broadcast %cst_22 : f32 to vector<2x1xf32>
      %30 = arith.subf %29, %28 : vector<2x1xf32>
      %c0_23 = arith.constant 0 : index
      %c0_24 = arith.constant 0 : index
      %31 = vector.load %arg4[%c0_23, %c0_24] : memref<2x1xf32, #tpu.memory_space<vmem>>, vector<2x1xf32>
      tpu.vector_store %arg4[%c0_23, %c0_24], %30 {strides = array<i32>} : memref<2x1xf32, #tpu.memory_space<vmem>>, vector<2x1xf32>,
    } else {
    }
    return
  }
  func.func @transform_0(%arg0: i32, %arg1: i32) -> (i32, i32) {
    %c1_i32 = arith.constant 1 : i32
    %0 = arith.addi %arg1, %c1_i32 : i32
    %c0_i32 = arith.constant 0 : i32
    return %arg0, %0 : i32, i32
  }
  func.func @transform_1(%arg0: i32, %arg1: i32) -> (i32, i32) {
    %c0_i32 = arith.constant 0 : i32
    return %arg0, %arg1 : i32, i32
  }
  func.func @transform_2(%arg0: i32, %arg1: i32) -> (i32, i32) {
    %c0_i32 = arith.constant 0 : i32
    %c0_i32_0 = arith.constant 0 : i32
    return %arg0, %c0_i32 : i32, i32
  }
}

</mosaic_0001>

<llo_original>
// kernel: tpu_custom_call.1
$region0: #{tpu_custom_call.1}
  #allocation0 [shape = 'u32[]', space=smem, size = 0x4, offset = 0x4, fixed_abs, tag = 'smem constant byte address 0x4 - core index']
  #allocation1 [shape = 'u32[144,128]{1,0:T(1,128)}', space=vmem, size = 0x12000, scoped, tag = 'internal scratch']
  #allocation2 [shape = 'f32[2,1]{1,0:T(2,128)}', space=vmem, size = 0x400, scoped, tag = 'scratch operand']
  #allocation3 [shape = 'f32[2,1]{1,0:T(2,128)}', space=vmem, size = 0x400, scoped, tag = 'scratch operand']
  %s0 = inlined_call_operand.hbm [shape: f32[2,512], index: 0, kind: input, shape index: {}]
  %s1 = inlined_call_operand.hbm [shape: f32[2,256], index: 1, kind: input, shape index: {}]
  %s2 = inlined_call_operand.vmem [shape: f32[2,1], index: 2, kind: output, shape index: {}]
  %s3 = sld [smem:[#allocation0]]
  $region34: #{tpu_custom_call.1} parent=0
    _
  %s5 = ssub.s32 1, %s3
  %s6 = scalar_select 0, %s5, %s3
  $region1: #{tpu_custom_call.1} parent=0
    #allocation4 [shape = 'u8[2048]{0}', space=vmem, size = 0x800, scoped, tag = 'input window, operand 0, single buffered']
    #allocation5 [shape = 's32[1]{0}', space=sflag, size = 0x4, scoped, tag = 'scoped memory for tpu_custom_call.1']
    #allocation6 [shape = 'u8[2048]{0}', space=vmem, size = 0x800, scoped, tag = 'input window, operand 1, single buffered']
    #allocation7 [shape = 's32[1]{0}', space=sflag, size = 0x4, scoped, tag = 'scoped memory for tpu_custom_call.1']
    %7 = vsyncpa [#allocation5], 0
    %8 = vsyncpa [#allocation7], 0
    // Predicated region
    $region2: #{tpu_custom_call.1} parent=1 // pred_check
      _
    $region3: #{tpu_custom_call.1} parent=1 // pred_check_branch
      %10 = sbr.rel (0) target = $region5
    $region4: #{tpu_custom_call.1} parent=1 // pred_region
      %s11 = sadd.s32 0, 1
      %s12 = smul.u32 2, %s11
      %s14 = ssub.s32 64, 64
      %15 = vsyncadd [#allocation5], %s14
      %s16 = smul.addr %s12, 32
      %s17 = scalar_lea.hbm %s0, %s16
      %s19 = sshll.u32 [#allocation4], 4
      %s20 = int_to_ptr.vmem [resolvable:$true] %s19
      %22 = dma.hbm_to_vmem [thread:$0]  %s17, 64, %s20, [#allocation5]
    $region5: #{tpu_custom_call.1} parent=1 // pred_fallthru
      _
    // Predicated region
    $region6: #{tpu_custom_call.1} parent=1 // pred_check
      _
    $region7: #{tpu_custom_call.1} parent=1 // pred_check_branch
      %24 = sbr.rel (0) target = $region9
    $region8: #{tpu_custom_call.1} parent=1 // pred_region
      %s26 = ssub.s32 64, 64
      %27 = vsyncadd [#allocation7], %s26
      %s29 = sshll.u32 [#allocation6], 4
      %s30 = int_to_ptr.vmem [resolvable:$true] %s29
      %32 = dma.hbm_to_vmem [thread:$0]  %s1, 64, %s30, [#allocation7]
    $region9: #{tpu_custom_call.1} parent=1 // pred_fallthru
      _
    // Predicated region
    $region10: #{tpu_custom_call.1} parent=1 // pred_check
      _
    $region11: #{tpu_custom_call.1} parent=1 // pred_check_branch
      %34 = sbr.rel (0) target = $region13
    $region12: #{tpu_custom_call.1} parent=1 // pred_region
      %35 = dma.done [#allocation5], 64
    $region13: #{tpu_custom_call.1} parent=1 // pred_fallthru
      _
    // Predicated region
    $region14: #{tpu_custom_call.1} parent=1 // pred_check
      _
    $region15: #{tpu_custom_call.1} parent=1 // pred_check_branch
      %37 = sbr.rel (0) target = $region17
    $region16: #{tpu_custom_call.1} parent=1 // pred_region
      %38 = dma.done [#allocation7], 64
    $region17: #{tpu_custom_call.1} parent=1 // pred_fallthru
      _
    %s39 = sadd.s32 0, 1
    %s40 = smul.u32 2, %s39
    %p41 = scmp.eq.s32.totalorder 0, 0
    // Predicated region
    $region18: #{tpu_custom_call.1} parent=1 // pred_check
      %p42 = pneg %p41
    $region19: #{tpu_custom_call.1} parent=1 // pred_check_branch
      %44 = sbr.rel (%p42) target = $region21
    $region20: #{tpu_custom_call.1} parent=1 // pred_region
      %vm45 = vcmask 1024
      %46 = vst.msk [vmem:[#allocation2] sm:$0x3] %vm45, 0.0
      %47 = vst.msk [vmem:[#allocation3] sm:$0x3] %vm45, 0.0
    $region21: #{tpu_custom_call.1} parent=1 // pred_fallthru
      _
    %v48 = vld [vmem:[#allocation4] sm:$0xf]
    %v49 = vld [vmem:[#allocation6] sm:$0xf]
    %v50 = vld [vmem:[#allocation2] sm:$0x3]
    %v51 = vmul.f32 %v48, %v49
    %v54 = vunpack.c.l.s4 1983009808
    %v55 = vunpack.c.0.s8 %v54
    %v56 = vlaneseq
    %v57 = vshrl.u32 %v56, 7
    %v58 = vsub.s32 %v55, %v57
    %v59 = vrot.slane %v51, %v58
    %v60 = vcombine.high %v59, %v59
    %vm63 = vcmask 1041408
    %v64 = vsel %vm63, %v59, 0.0
    %v65 = vsel %vm63, %v60, 0.0
    %v66 = vadd.f32 %v64, %v65
    %67 = vadd.xlane.f32.xlu0 %v66
    %v68 = vpop.xlane.xlu0 %67
    %v69 = vadd.f32 %v50, %v68
    %vm70 = vcmask 1024
    %71 = vst.msk [vmem:[#allocation2] sm:$0x3] %vm70, %v69
    %v72 = vld [vmem:[#allocation3] sm:$0x3]
    %v73 = vadd.f32 %v48, %v49
    %v76 = vunpack.c.l.s4 1983009808
    %v77 = vunpack.c.0.s8 %v76
    %v78 = vlaneseq
    %v79 = vshrl.u32 %v78, 7
    %v80 = vsub.s32 %v77, %v79
    %v81 = vrot.slane %v73, %v80
    %v82 = vcombine.high %v81, %v81
    %v85 = vsel %vm63, %v81, 0.0
    %v86 = vsel %vm63, %v82, 0.0
    %v87 = vadd.f32 %v85, %v86
    %88 = vadd.xlane.f32.xlu0 %v87
    %v89 = vpop.xlane.xlu0 %88
    %v90 = vadd.f32 %v72, %v89
    %91 = vst.msk [vmem:[#allocation3] sm:$0x3] %vm70, %v90
    // Predicated region
    $region22: #{tpu_custom_call.1} parent=1 // pred_check
      %p92 = pneg %p41
    $region23: #{tpu_custom_call.1} parent=1 // pred_check_branch
      %94 = sbr.rel (%p92) target = $region25
    $region24: #{tpu_custom_call.1} parent=1 // pred_region
      %v95 = vld [vmem:[#allocation2] sm:$0x3]
      %v96 = vmul.f32 %v95, 2.0
      %v97 = vadd.f32 %v96, 1.0
      %v98 = vld [vmem:[#allocation3] sm:$0x3]
      %v99 = vadd.f32 %v98, 1.0
      %v100 = vrcp.pop %v99
      %v101 = vmul.f32 %v97, %v100
      %v102 = vsub.f32 1.0, %v101
      %103 = vst.msk [vmem:[%s2] sm:$0x3] %vm70, %v102
    $region25: #{tpu_custom_call.1} parent=1 // pred_fallthru
      _
    // Predicated region
    $region26: #{tpu_custom_call.1} parent=1 // pred_check
      _
    $region27: #{tpu_custom_call.1} parent=1 // pred_check_branch
      %105 = sbr.rel (0) target = $region29
    $region28: #{tpu_custom_call.1} parent=1 // pred_region
      _
    $region29: #{tpu_custom_call.1} parent=1 // pred_fallthru
      _
    // Predicated region
    $region30: #{tpu_custom_call.1} parent=1 // pred_check
      _
    $region31: #{tpu_custom_call.1} parent=1 // pred_check_branch
      %107 = sbr.rel (0) target = $region33
    $region32: #{tpu_custom_call.1} parent=1 // pred_region
      _
    $region33: #{tpu_custom_call.1} parent=1 // pred_fallthru
      _
    %108 = vsyncpa [#allocation5], 1
    %109 = vsyncpa [#allocation7], 1

</llo_original>
